<compile_context>
chip_gen: v7x
topology: tpu7x:2x2x1
jax: 0.10.0
libtpu: 0.0.40
codegen_flags: <defaults>
</compile_context>

<pallas_src>
import jax
import jax.numpy as jnp
from jax import lax
from jax.experimental import pallas as pl
from jax.experimental.pallas import tpu as pltpu


def _round_up(x, m):
    return ((x + m - 1) // m) * m


def _autoencoder_kernel(x_ref, w_ref, b1_ref, b2_ref, proj_ref, xhat_ref):
    """One batch-tile of the tied-weight autoencoder forward pass."""
    # Cast matmul operands to bf16 in VMEM; accumulate in f32 on the MXU.
    x = x_ref[...].astype(jnp.bfloat16)      # (tb, in_p)
    w = w_ref[...].astype(jnp.bfloat16)      # (hid_p, in_p)

    # Encoder: lin1[b, h] = sum_i x[b, i] * W[h, i]
    # (contract input dim of both operands -> W used as-is, no transpose).
    lin1 = lax.dot_general(
        x, w,
        dimension_numbers=(((1,), (1,)), ((), ())),
        preferred_element_type=jnp.float32,
    ) + b1_ref[...]
    proj = jnp.maximum(lin1, 0.0)            # f32 (tb, hid_p)

    # Decoder (tied weights: linear2.weight = W.T  =>  proj @ W).
    lin2 = lax.dot_general(
        proj.astype(jnp.bfloat16), w,
        dimension_numbers=(((1,), (0,)), ((), ())),
        preferred_element_type=jnp.float32,
    ) + b2_ref[...]
    xhat = jax.nn.sigmoid(lin2)              # f32 (tb, in_p)

    proj_ref[...] = proj.astype(proj_ref.dtype)
    xhat_ref[...] = xhat.astype(xhat_ref.dtype)


def my_autoencodeur_forward(x, w, b1, b2, *, batch_tile=256):
    """Pallas forward pass. x: (B, input_dim); w: (hidden_dim, input_dim)."""
    B, input_dim = x.shape
    hidden_dim, _ = w.shape

    # Lane-dense feature dims (multiples of 128) so stores are unmasked vst.
    hid_p = _round_up(hidden_dim, 128)
    in_p = _round_up(input_dim, 128)

    # Batch tile: multiple of 8 (sublane), capped by the (padded) batch.
    tb = max(8, min(_round_up(batch_tile, 8), _round_up(B, 8)))
    b_p = _round_up(B, tb)
    if b_p // tb == 1 and tb >= 16:
        # Keep >= 2 grid steps so the batch axis can shard across both
        # TensorCores on v7x (dimension_semantics=("parallel",)).
        tb = _round_up(tb // 2, 8)
        b_p = _round_up(B, tb)

    # Zero-pad (zero rows/cols do not perturb the valid region of the math).
    x_p = jnp.pad(x, ((0, b_p - B), (0, in_p - input_dim)))
    w_p = jnp.pad(w, ((0, hid_p - hidden_dim), (0, in_p - input_dim)))
    b1_p = jnp.pad(b1, ((0, hid_p - hidden_dim),)).reshape(1, hid_p)
    b2_p = jnp.pad(b2, ((0, in_p - input_dim),)).reshape(1, in_p)

    grid = (b_p // tb,)

    proj_p, xhat_p = pl.pallas_call(
        _autoencoder_kernel,
        out_shape=(
            jax.ShapeDtypeStruct((b_p, hid_p), jnp.float32),
            jax.ShapeDtypeStruct((b_p, in_p), jnp.float32),
        ),
        grid_spec=pltpu.PrefetchScalarGridSpec(
            num_scalar_prefetch=0,
            grid=grid,
            in_specs=[
                pl.BlockSpec((tb, in_p), lambda i: (i, 0)),       # X tile
                pl.BlockSpec((hid_p, in_p), lambda i: (0, 0)),    # W (grid-invariant)
                pl.BlockSpec((1, hid_p), lambda i: (0, 0)),       # b1
                pl.BlockSpec((1, in_p), lambda i: (0, 0)),        # b2
            ],
            out_specs=[
                pl.BlockSpec((tb, hid_p), lambda i: (i, 0)),      # projection
                pl.BlockSpec((tb, in_p), lambda i: (i, 0)),       # Xhat
            ],
        ),
        compiler_params=pltpu.CompilerParams(
            dimension_semantics=("parallel",),
        ),
    )(x_p, w_p, b1_p, b2_p)

    # Strip padding (batch rows, padded feature columns).
    return proj_p[:B, :hidden_dim], xhat_p[:B, :input_dim]


def _reference_forward(x, w, b1, b2):
    """Plain-JAX f32 reference mirroring the PyTorch module exactly."""
    lin1 = x @ w.T + b1
    proj = jnp.maximum(lin1, 0.0)
    lin2 = proj @ w + b2          # linear2.weight = W.T  =>  proj @ (W.T).T = proj @ W
    xhat = jax.nn.sigmoid(lin2)
    return proj, xhat


if __name__ == "__main__":
    # Small, module-consistent shapes (2 grid steps at batch_tile=256).
    batch = 512
    input_dim = 256   # e.g. flattened image features
    hidden_dim = 64

    key = jax.random.PRNGKey(0)
    kx, kw, kb1, kb2 = jax.random.split(key, 4)

    x = jax.random.normal(kx, (batch, input_dim), dtype=jnp.float32)
    # Deterministic parameter init (synthetic; shapes match nn.Linear).
    w = jax.random.normal(kw, (hidden_dim, input_dim), dtype=jnp.float32) * 0.05
    b1 = jax.random.normal(kb1, (hidden_dim,), dtype=jnp.float32) * 0.01
    b2 = jax.random.normal(kb2, (input_dim,), dtype=jnp.float32) * 0.01

    proj, xhat = my_autoencodeur_forward(x, w, b1, b2, batch_tile=256)
    jax.block_until_ready((proj, xhat))

    # Correctness check against plain-JAX f32 reference of the PyTorch forward.
    # Tolerance is loosened because matmul inputs run in bf16 (f32 accumulation).
    proj_ref, xhat_ref = _reference_forward(x, w, b1, b2)
    assert proj.shape == (batch, hidden_dim) and xhat.shape == (batch, input_dim)
    assert jnp.allclose(proj, proj_ref, atol=2e-2, rtol=2e-2)
    assert jnp.allclose(xhat, xhat_ref, atol=2e-2, rtol=2e-2)

    print("KERNEL_OK")
</pallas_src>

<mosaic_0001>
module attributes {stable_mosaic.version = 11 : i64} {
  func.func @_autoencoder_kernel(%arg0: i32, %arg1: memref<256x256xf32, #tpu.memory_space<vmem>>, %arg2: memref<128x256xf32, #tpu.memory_space<vmem>>, %arg3: memref<1x128xf32, #tpu.memory_space<vmem>>, %arg4: memref<1x256xf32, #tpu.memory_space<vmem>>, %arg5: memref<256x128xf32, #tpu.memory_space<vmem>>, %arg6: memref<256x256xf32, #tpu.memory_space<vmem>>) attributes {dimension_semantics = [#tpu.dimension_semantics<parallel>], iteration_bounds = array<i64: 2>, scalar_prefetch = 0 : i64, scratch_operands = 0 : i64, tpu.core_type = #tpu.core_type<tc>, window_params = [{transform_indices = @transform_0, window_bounds = array<i64: 256, 256>}, {pipeline_mode = #tpu.pipeline_mode<synchronous>, transform_indices = @transform_1, window_bounds = array<i64: 128, 256>}, {pipeline_mode = #tpu.pipeline_mode<synchronous>, transform_indices = @transform_2, window_bounds = array<i64: 1, 128>}, {pipeline_mode = #tpu.pipeline_mode<synchronous>, transform_indices = @transform_3, window_bounds = array<i64: 1, 256>}, {transform_indices = @transform_4, window_bounds = array<i64: 256, 128>}, {transform_indices = @transform_5, window_bounds = array<i64: 256, 256>}]} {
    %c0 = arith.constant 0 : index
    %c0_0 = arith.constant 0 : index
    %0 = vector.load %arg1[%c0, %c0_0] : memref<256x256xf32, #tpu.memory_space<vmem>>, vector<256x256xf32>
    %1 = arith.truncf %0 : vector<256x256xf32> to vector<256x256xbf16>
    %c0_1 = arith.constant 0 : index
    %c0_2 = arith.constant 0 : index
    %2 = vector.load %arg2[%c0_1, %c0_2] : memref<128x256xf32, #tpu.memory_space<vmem>>, vector<128x256xf32>
    %3 = arith.truncf %2 : vector<128x256xf32> to vector<128x256xbf16>
    %cst = arith.constant dense<0.000000e+00> : vector<256x128xf32>
    %4 = tpu.matmul %1, %3, %cst {dimension_numbers = #tpu.dot_dimension_numbers<[1], [1], [0], [0], [0, 0, 1, 0], [], []>} : vector<256x256xbf16>, vector<128x256xbf16>, vector<256x128xf32> -> vector<256x128xf32>
    %c0_3 = arith.constant 0 : index
    %c0_4 = arith.constant 0 : index
    %5 = vector.load %arg3[%c0_3, %c0_4] : memref<1x128xf32, #tpu.memory_space<vmem>>, vector<1x128xf32>
    %6 = vector.broadcast %5 : vector<1x128xf32> to vector<256x128xf32>
    %7 = arith.addf %4, %6 : vector<256x128xf32>
    %cst_5 = arith.constant 0.000000e+00 : f32
    %8 = vector.broadcast %cst_5 : f32 to vector<256x128xf32>
    %9 = arith.maximumf %7, %8 : vector<256x128xf32>
    %10 = arith.truncf %9 : vector<256x128xf32> to vector<256x128xbf16>
    %cst_6 = arith.constant dense<0.000000e+00> : vector<256x256xf32>
    %11 = tpu.matmul %10, %3, %cst_6 {dimension_numbers = #tpu.dot_dimension_numbers<[1], [0], [0], [1], [0, 0, 1, 1], [], []>} : vector<256x128xbf16>, vector<128x256xbf16>, vector<256x256xf32> -> vector<256x256xf32>
    %c0_7 = arith.constant 0 : index
    %c0_8 = arith.constant 0 : index
    %12 = vector.load %arg4[%c0_7, %c0_8] : memref<1x256xf32, #tpu.memory_space<vmem>>, vector<1x256xf32>
    %13 = vector.broadcast %12 : vector<1x256xf32> to vector<256x256xf32>
    %14 = arith.addf %11, %13 : vector<256x256xf32>
    %15 = arith.negf %14 : vector<256x256xf32>
    %16 = math.exp %15 : vector<256x256xf32>
    %cst_9 = arith.constant 1.000000e+00 : f32
    %17 = vector.broadcast %cst_9 : f32 to vector<256x256xf32>
    %18 = arith.addf %17, %16 : vector<256x256xf32>
    %19 = arith.divf %17, %18 : vector<256x256xf32>
    %c0_10 = arith.constant 0 : index
    %c0_11 = arith.constant 0 : index
    %20 = vector.load %arg5[%c0_10, %c0_11] : memref<256x128xf32, #tpu.memory_space<vmem>>, vector<256x128xf32>
    tpu.vector_store %arg5[%c0_10, %c0_11], %9 {strides = array<i32>} : memref<256x128xf32, #tpu.memory_space<vmem>>, vector<256x128xf32>,
    %c0_12 = arith.constant 0 : index
    %c0_13 = arith.constant 0 : index
    %21 = vector.load %arg6[%c0_12, %c0_13] : memref<256x256xf32, #tpu.memory_space<vmem>>, vector<256x256xf32>
    tpu.vector_store %arg6[%c0_12, %c0_13], %19 {strides = array<i32>} : memref<256x256xf32, #tpu.memory_space<vmem>>, vector<256x256xf32>,
    return
  }
  func.func @transform_0(%arg0: i32) -> (i32, i32) {
    %c0_i32 = arith.constant 0 : i32
    %c0_i32_0 = arith.constant 0 : i32
    return %arg0, %c0_i32 : i32, i32
  }
  func.func @transform_1(%arg0: i32) -> (i32, i32) {
    %c0_i32 = arith.constant 0 : i32
    %c0_i32_0 = arith.constant 0 : i32
    %c0_i32_1 = arith.constant 0 : i32
    return %c0_i32, %c0_i32_0 : i32, i32
  }
  func.func @transform_2(%arg0: i32) -> (i32, i32) {
    %c0_i32 = arith.constant 0 : i32
    %c0_i32_0 = arith.constant 0 : i32
    %c0_i32_1 = arith.constant 0 : i32
    return %c0_i32, %c0_i32_0 : i32, i32
  }
  func.func @transform_3(%arg0: i32) -> (i32, i32) {
    %c0_i32 = arith.constant 0 : i32
    %c0_i32_0 = arith.constant 0 : i32
    %c0_i32_1 = arith.constant 0 : i32
    return %c0_i32, %c0_i32_0 : i32, i32
  }
  func.func @transform_4(%arg0: i32) -> (i32, i32) {
    %c0_i32 = arith.constant 0 : i32
    %c0_i32_0 = arith.constant 0 : i32
    return %arg0, %c0_i32 : i32, i32
  }
  func.func @transform_5(%arg0: i32) -> (i32, i32) {
    %c0_i32 = arith.constant 0 : i32
    %c0_i32_0 = arith.constant 0 : i32
    return %arg0, %c0_i32 : i32, i32
  }
}

</mosaic_0001>

<llo_original>
// kernel: tpu_custom_call.1
$region0: #{tpu_custom_call.1}
  #allocation0 [shape = 'u32[]', space=smem, size = 0x4, offset = 0x4, fixed_abs, tag = 'smem constant byte address 0x4 - core index']
  #allocation1 [shape = 'u32[144,128]{1,0:T(1,128)}', space=vmem, size = 0x12000, scoped, tag = 'internal scratch']
  %s0 = inlined_call_operand.hbm [shape: f32[512,256], index: 0, kind: input, shape index: {}]
  %s1 = inlined_call_operand.hbm [shape: f32[128,256], index: 1, kind: input, shape index: {}]
  %s2 = inlined_call_operand.vmem [shape: f32[1,128], index: 2, kind: input, shape index: {}]
  %s3 = inlined_call_operand.vmem [shape: f32[1,256], index: 3, kind: input, shape index: {}]
  %s4 = inlined_call_operand.hbm [shape: f32[512,128], index: 4, kind: output, shape index: {0}]
  %s5 = inlined_call_operand.hbm [shape: f32[512,256], index: 5, kind: output, shape index: {1}]
  %6 = xla_tuple %s4, %s5
  %s7 = sld [smem:[#allocation0]]
  $region65: #{tpu_custom_call.1} parent=0
    _
  %s9 = ssub.s32 1, %s7
  %s10 = scalar_select 0, %s9, %s7
  $region1: #{tpu_custom_call.1} parent=0
    #allocation2 [shape = 'u8[524288]{0}', space=vmem, size = 0x80000, scoped, tag = 'input window, operand 0']
    #allocation3 [shape = 's32[2]{0}', space=sflag, size = 0x8, scoped, tag = 'scoped memory for tpu_custom_call.1']
    #allocation4 [shape = 's32[2]{0}', space=sflag, size = 0x8, scoped, tag = 'scoped memory for tpu_custom_call.1']
    #allocation5 [shape = 'u8[131072]{0}', space=vmem, size = 0x20000, scoped, tag = 'input window, operand 1, single buffered']
    #allocation6 [shape = 's32[1]{0}', space=sflag, size = 0x4, scoped, tag = 'scoped memory for tpu_custom_call.1']
    #allocation7 [shape = 'u8[262144]{0}', space=vmem, size = 0x40000, scoped, tag = 'output window, operand 0']
    #allocation8 [shape = 'u8[524288]{0}', space=vmem, size = 0x80000, scoped, tag = 'output window, operand 1']
    #allocation9 [shape = 's32[2]{0}', space=sflag, size = 0x8, scoped, tag = 'scoped memory for tpu_custom_call.1']
    %11 = vsyncpa [#allocation3], 0
    %s12 = scalar_lea.sflag [#allocation3], 1
    %13 = vsyncpa %s12, 0
    %14 = vsyncpa [#allocation6], 0
    %15 = vsyncpa [#allocation4], 0
    %s16 = scalar_lea.sflag [#allocation4], 1
    %17 = vsyncpa %s16, 0
    %18 = vsyncpa [#allocation9], 0
    %s19 = scalar_lea.sflag [#allocation9], 1
    %20 = vsyncpa %s19, 0
    loop: start=0, step=1, limit=4
    $region2: #{tpu_custom_call.1} parent=1 // loop_pre_header
      _
    $region3: #{tpu_custom_call.1} parent=1 // loop_header
      %s22 = sphi 0, %s26
      %p23 = scmp.ge.s32.totalorder %s22, 4
      %s32 = sphi 0, %s34
      %s35 = sphi 0, %s32
      %s36 = sphi 0, %s35
      %s52 = sphi 0, %s36
      %s56 = sphi 0, %s56
      %s58 = sphi 0, %s56
      %s59 = sphi 0, %s58
      %s73 = sphi 0, %s59
      %s77 = sphi 0, %s77
      %s79 = sphi 0, %s77
      %s80 = sphi 0, %s79
      %s94 = sphi 0, %s80
      %s98 = sphi 0, %s98
      %s100 = sphi 0, %s98
      %s101 = sphi 0, %s100
      %s115 = sphi 0, %s101
      %s121 = sphi 0, %s123
      %s124 = sphi 0, %s121
      %s125 = sphi 0, %s124
      %s141 = sphi 0, %s125
      %s147 = sphi 0, %s149
      %s150 = sphi 0, %s147
      %s151 = sphi 0, %s150
      %s167 = sphi 0, %s151
    $region4: #{tpu_custom_call.1} parent=1 // loop_header_branch
      %25 = sbr.rel (%p23) target = $region8
    $region5: #{tpu_custom_call.1} parent=1 // loop_body
      %s27 = ssub.s32 %s22, 1
      %s28 = ssub.s32 %s22, 2
      %s29 = sadd.s32 %s22, 1
      %s30 = ssub.s32 %s22, %s29
      %p31 = scmp.eq.s32.totalorder %s30, 0
      %s33 = sadd.s32 %s32, 1
      %s34 = scalar_select %p31, %s32, %s33
      %p37 = pneg %p31
      %p38 = scmp.eq.s32.totalorder %s22, 1
      %p39 = por %p37, %p38
      %p40 = scmp.ne.s32.totalorder %s32, %s35
      %p41 = scmp.eq.s32.totalorder %s22, 0
      %p42 = por %p40, %p41
      %p43 = scmp.ne.s32.totalorder %s32, %s35
      %p44 = scmp.eq.s32.totalorder %s27, 1
      %p45 = por %p43, %p44
      %p46 = scmp.ne.s32.totalorder %s35, %s36
      %p47 = scmp.eq.s32.totalorder %s27, 0
      %p48 = por %p46, %p47
      %p49 = scmp.ne.s32.totalorder %s35, %s36
      %p50 = scmp.eq.s32.totalorder %s28, 1
      %p51 = por %p49, %p50
      %p53 = scmp.ne.s32.totalorder %s36, %s52
      %p54 = scmp.eq.s32.totalorder %s28, 0
      %p55 = por %p53, %p54
      %s57 = sadd.s32 %s56, 1
      %p60 = scmp.eq.s32.totalorder %s22, 1
      %p61 = scmp.ne.s32.totalorder %s56, %s58
      %p62 = scmp.eq.s32.totalorder %s22, 0
      %p63 = por %p61, %p62
      %p64 = scmp.ne.s32.totalorder %s56, %s58
      %p65 = scmp.eq.s32.totalorder %s27, 1
      %p66 = por %p64, %p65
      %p67 = scmp.ne.s32.totalorder %s58, %s59
      %p68 = scmp.eq.s32.totalorder %s27, 0
      %p69 = por %p67, %p68
      %p70 = scmp.ne.s32.totalorder %s58, %s59
      %p71 = scmp.eq.s32.totalorder %s28, 1
      %p72 = por %p70, %p71
      %p74 = scmp.ne.s32.totalorder %s59, %s73
      %p75 = scmp.eq.s32.totalorder %s28, 0
      %p76 = por %p74, %p75
      %s78 = sadd.s32 %s77, 1
      %p81 = scmp.eq.s32.totalorder %s22, 1
      %p82 = scmp.ne.s32.totalorder %s77, %s79
      %p83 = scmp.eq.s32.totalorder %s22, 0
      %p84 = por %p82, %p83
      %p85 = scmp.ne.s32.totalorder %s77, %s79
      %p86 = scmp.eq.s32.totalorder %s27, 1
      %p87 = por %p85, %p86
      %p88 = scmp.ne.s32.totalorder %s79, %s80
      %p89 = scmp.eq.s32.totalorder %s27, 0
      %p90 = por %p88, %p89
      %p91 = scmp.ne.s32.totalorder %s79, %s80
      %p92 = scmp.eq.s32.totalorder %s28, 1
      %p93 = por %p91, %p92
      %p95 = scmp.ne.s32.totalorder %s80, %s94
      %p96 = scmp.eq.s32.totalorder %s28, 0
      %p97 = por %p95, %p96
      %s99 = sadd.s32 %s98, 1
      %p102 = scmp.eq.s32.totalorder %s22, 1
      %p103 = scmp.ne.s32.totalorder %s98, %s100
      %p104 = scmp.eq.s32.totalorder %s22, 0
      %p105 = por %p103, %p104
      %p106 = scmp.ne.s32.totalorder %s98, %s100
      %p107 = scmp.eq.s32.totalorder %s27, 1
      %p108 = por %p106, %p107
      %p109 = scmp.ne.s32.totalorder %s100, %s101
      %p110 = scmp.eq.s32.totalorder %s27, 0
      %p111 = por %p109, %p110
      %p112 = scmp.ne.s32.totalorder %s100, %s101
      %p113 = scmp.eq.s32.totalorder %s28, 1
      %p114 = por %p112, %p113
      %p116 = scmp.ne.s32.totalorder %s101, %s115
      %p117 = scmp.eq.s32.totalorder %s28, 0
      %p118 = por %p116, %p117
      %s119 = ssub.s32 %s22, %s29
      %p120 = scmp.eq.s32.totalorder %s119, 0
      %s122 = sadd.s32 %s121, 1
      %s123 = scalar_select %p120, %s121, %s122
      %p126 = pneg %p120
      %p127 = scmp.eq.s32.totalorder %s22, 1
      %p128 = por %p126, %p127
      %p129 = scmp.ne.s32.totalorder %s121, %s124
      %p130 = scmp.eq.s32.totalorder %s22, 0
      %p131 = por %p129, %p130
      %p132 = scmp.ne.s32.totalorder %s121, %s124
      %p133 = scmp.eq.s32.totalorder %s27, 1
      %p134 = por %p132, %p133
      %p135 = scmp.ne.s32.totalorder %s124, %s125
      %p136 = scmp.eq.s32.totalorder %s27, 0
      %p137 = por %p135, %p136
      %p138 = scmp.ne.s32.totalorder %s124, %s125
      %p139 = scmp.eq.s32.totalorder %s28, 1
      %p140 = por %p138, %p139
      %p142 = scmp.ne.s32.totalorder %s125, %s141
      %p143 = scmp.eq.s32.totalorder %s28, 0
      %p144 = por %p142, %p143
      %s145 = ssub.s32 %s22, %s29
      %p146 = scmp.eq.s32.totalorder %s145, 0
      %s148 = sadd.s32 %s147, 1
      %s149 = scalar_select %p146, %s147, %s148
      %p152 = pneg %p146
      %p153 = scmp.eq.s32.totalorder %s22, 1
      %p154 = por %p152, %p153
      %p155 = scmp.ne.s32.totalorder %s147, %s150
      %p156 = scmp.eq.s32.totalorder %s22, 0
      %p157 = por %p155, %p156
      %p158 = scmp.ne.s32.totalorder %s147, %s150
      %p159 = scmp.eq.s32.totalorder %s27, 1
      %p160 = por %p158, %p159
      %p161 = scmp.ne.s32.totalorder %s150, %s151
      %p162 = scmp.eq.s32.totalorder %s27, 0
      %p163 = por %p161, %p162
      %p164 = scmp.ne.s32.totalorder %s150, %s151
      %p165 = scmp.eq.s32.totalorder %s28, 1
      %p166 = por %p164, %p165
      %p168 = scmp.ne.s32.totalorder %s151, %s167
      %p169 = scmp.eq.s32.totalorder %s28, 0
      %p170 = por %p168, %p169
      %p171 = scmp.le.s32.totalorder 1, %s22
      %p172 = scmp.lt.s32.totalorder %s22, 3
      %p173 = pnand %p171, %p172
      %p174 = pneg %p173
      // Predicated region
      $region9: #{tpu_custom_call.1} parent=5 // pred_check
        _
      $region10: #{tpu_custom_call.1} parent=5 // pred_check_branch
        %176 = sbr.rel (%p173) target = $region12
      $region11: #{tpu_custom_call.1} parent=5 // pred_region
        %s177 = ssub.s32 %s22, 1
        // Predicated region
        $region13: #{tpu_custom_call.1} parent=11 // pred_check
          %p178 = pneg %p69
        $region14: #{tpu_custom_call.1} parent=11 // pred_check_branch
          %180 = sbr.rel (%p178) target = $region16
        $region15: #{tpu_custom_call.1} parent=11 // pred_region
          %s182 = ssub.s32 4096, 4096
          %183 = vsyncadd [#allocation6], %s182
          %s184 = sshll.u32 [#allocation5], 4
          %s185 = int_to_ptr.vmem [resolvable:$true] %s184
          %190 = dma.hbm_to_vmem [thread:$0]  %s1, 4096, %s185, [#allocation6], 256, 256, 16
        $region16: #{tpu_custom_call.1} parent=11 // pred_fallthru
          _
        // Predicated region
        $region17: #{tpu_custom_call.1} parent=11 // pred_check
          %p191 = pneg %p90
        $region18: #{tpu_custom_call.1} parent=11 // pred_check_branch
          %193 = sbr.rel (%p191) target = $region20
        $region19: #{tpu_custom_call.1} parent=11 // pred_region
          _
        $region20: #{tpu_custom_call.1} parent=11 // pred_fallthru
          _
        // Predicated region
        $region21: #{tpu_custom_call.1} parent=11 // pred_check
          %p194 = pneg %p111
        $region22: #{tpu_custom_call.1} parent=11 // pred_check_branch
          %196 = sbr.rel (%p194) target = $region24
        $region23: #{tpu_custom_call.1} parent=11 // pred_region
          _
        $region24: #{tpu_custom_call.1} parent=11 // pred_fallthru
          _
      $region12: #{tpu_custom_call.1} parent=5 // pred_fallthru
        _
      %p197 = scmp.lt.s32.totalorder %s22, 2
      // Predicated region
      $region25: #{tpu_custom_call.1} parent=5 // pred_check
        %p198 = pneg %p197
      $region26: #{tpu_custom_call.1} parent=5 // pred_check_branch
        %200 = sbr.rel (%p198) target = $region28
      $region27: #{tpu_custom_call.1} parent=5 // pred_region
        // Predicated region
        $region29: #{tpu_custom_call.1} parent=27 // pred_check
          %p201 = pneg %p42
        $region30: #{tpu_custom_call.1} parent=27 // pred_check_branch
          %203 = sbr.rel (%p201) target = $region32
        $region31: #{tpu_custom_call.1} parent=27 // pred_region
          %s204 = sand.u32 %s32, 1
          %s205 = scalar_lea.sflag [#allocation3], %s204
          %s206 = sand.u32 %s32, 1
          %s207 = smul.addr %s206, 512
          %s208 = scalar_lea.vmem [#allocation2], %s207
          %s209 = smul.u32 32, %s22
          %s211 = ssub.s32 8192, 8192
          %212 = vsyncadd %s205, %s211
          %s213 = smul.addr %s209, 2
          %s214 = smul.addr %s213, 128
          %s215 = scalar_lea.hbm %s0, %s214
          %s216 = sshll.u32 %s208, 4
          %s217 = int_to_ptr.vmem [resolvable:$true] %s216
          %222 = dma.hbm_to_vmem [thread:$0]  %s215, 8192, %s217, %s205, 256, 256, 16
        $region32: #{tpu_custom_call.1} parent=27 // pred_fallthru
          _
      $region28: #{tpu_custom_call.1} parent=5 // pred_fallthru
        _
      %p223 = scmp.le.s32.totalorder 1, %s22
      %p224 = scmp.lt.s32.totalorder %s22, 3
      %p225 = pnand %p223, %p224
      %p226 = pneg %p225
      // Predicated region
      $region33: #{tpu_custom_call.1} parent=5 // pred_check
        _
      $region34: #{tpu_custom_call.1} parent=5 // pred_check_branch
        %228 = sbr.rel (%p225) target = $region36
      $region35: #{tpu_custom_call.1} parent=5 // pred_region
        %s229 = ssub.s32 %s22, 1
        %s230 = sand.u32 %s35, 1
        %s231 = scalar_lea.sflag [#allocation3], %s230
        %s232 = sand.u32 %s35, 1
        %s233 = smul.addr %s232, 512
        %s234 = scalar_lea.vmem [#allocation2], %s233
        // Predicated region
        $region37: #{tpu_custom_call.1} parent=35 // pred_check
          %p235 = pneg %p48
        $region38: #{tpu_custom_call.1} parent=35 // pred_check_branch
          %237 = sbr.rel (%p235) target = $region40
        $region39: #{tpu_custom_call.1} parent=35 // pred_region
          %238 = dma.done %s231, 8192
        $region40: #{tpu_custom_call.1} parent=35 // pred_fallthru
          _
        // Predicated region
        $region41: #{tpu_custom_call.1} parent=35 // pred_check
          %p239 = pneg %p69
        $region42: #{tpu_custom_call.1} parent=35 // pred_check_branch
          %241 = sbr.rel (%p239) target = $region44
        $region43: #{tpu_custom_call.1} parent=35 // pred_region
          %242 = dma.done [#allocation6], 4096
        $region44: #{tpu_custom_call.1} parent=35 // pred_fallthru
          _
        %s243 = sand.u32 %s35, 1
        %s244 = scalar_lea.sflag [#allocation3], %s243
        %s245 = sand.u32 %s35, 1
        %s246 = smul.addr %s245, 512
        %s247 = scalar_lea.vmem [#allocation2], %s246
        %p248 = pneg %p48
        %p249 = pneg %p45
        %p250 = pneg %p69
        %p251 = pneg %p66
        %p252 = pneg %p90
        %p253 = pneg %p87
        %p254 = pneg %p111
        %p255 = pneg %p108
        %p256 = pneg %p137
        %p257 = pneg %p134
        %s258 = sand.u32 %s124, 1
        %s259 = scalar_lea.sflag [#allocation4], %s258
        %s260 = sand.u32 %s124, 1
        %s261 = smul.addr %s260, 256
        %s262 = scalar_lea.vmem [#allocation7], %s261
        %p263 = pneg %p163
        %p264 = pneg %p160
        %s265 = sand.u32 %s150, 1
        %s266 = scalar_lea.sflag [#allocation9], %s265
        %s267 = sand.u32 %s150, 1
        %s268 = smul.addr %s267, 512
        %s269 = scalar_lea.vmem [#allocation8], %s268
        %s270 = smul.u32 32, %s27
        %s271 = smul.u32 32, %s27
        %s272 = smul.u32 32, %s27
        %v274 = vld [vmem:[%s234] sm:$0xff]
        %v275 = vld [vmem:[%s234 + $0x8] sm:$0xff]
        %v276 = vld [vmem:[%s234 + $0x10] sm:$0xff]
        %v277 = vld [vmem:[%s234 + $0x18] sm:$0xff]
        %v278 = vld [vmem:[%s234 + $0x20] sm:$0xff]
        %v279 = vld [vmem:[%s234 + $0x28] sm:$0xff]
        %v280 = vld [vmem:[%s234 + $0x30] sm:$0xff]
        %v281 = vld [vmem:[%s234 + $0x38] sm:$0xff]
        %v282 = vld [vmem:[%s234 + $0x40] sm:$0xff]
        %v283 = vld [vmem:[%s234 + $0x48] sm:$0xff]
        %v284 = vld [vmem:[%s234 + $0x50] sm:$0xff]
        %v285 = vld [vmem:[%s234 + $0x58] sm:$0xff]
        %v286 = vld [vmem:[%s234 + $0x60] sm:$0xff]
        %v287 = vld [vmem:[%s234 + $0x68] sm:$0xff]
        %v288 = vld [vmem:[%s234 + $0x70] sm:$0xff]
        %v289 = vld [vmem:[%s234 + $0x78] sm:$0xff]
        %v290 = vld [vmem:[%s234 + $0x80] sm:$0xff]
        %v291 = vld [vmem:[%s234 + $0x88] sm:$0xff]
        %v292 = vld [vmem:[%s234 + $0x90] sm:$0xff]
        %v293 = vld [vmem:[%s234 + $0x98] sm:$0xff]
        %v294 = vld [vmem:[%s234 + $0xa0] sm:$0xff]
        %v295 = vld [vmem:[%s234 + $0xa8] sm:$0xff]
        %v296 = vld [vmem:[%s234 + $0xb0] sm:$0xff]
        %v297 = vld [vmem:[%s234 + $0xb8] sm:$0xff]
        %v298 = vld [vmem:[%s234 + $0xc0] sm:$0xff]
        %v299 = vld [vmem:[%s234 + $0xc8] sm:$0xff]
        %v300 = vld [vmem:[%s234 + $0xd0] sm:$0xff]
        %v301 = vld [vmem:[%s234 + $0xd8] sm:$0xff]
        %v302 = vld [vmem:[%s234 + $0xe0] sm:$0xff]
        %v303 = vld [vmem:[%s234 + $0xe8] sm:$0xff]
        %v304 = vld [vmem:[%s234 + $0xf0] sm:$0xff]
        %v305 = vld [vmem:[%s234 + $0xf8] sm:$0xff]
        %v306 = vld [vmem:[%s234 + $0x100] sm:$0xff]
        %v307 = vld [vmem:[%s234 + $0x108] sm:$0xff]
        %v308 = vld [vmem:[%s234 + $0x110] sm:$0xff]
        %v309 = vld [vmem:[%s234 + $0x118] sm:$0xff]
        %v310 = vld [vmem:[%s234 + $0x120] sm:$0xff]
        %v311 = vld [vmem:[%s234 + $0x128] sm:$0xff]
        %v312 = vld [vmem:[%s234 + $0x130] sm:$0xff]
        %v313 = vld [vmem:[%s234 + $0x138] sm:$0xff]
        %v314 = vld [vmem:[%s234 + $0x140] sm:$0xff]
        %v315 = vld [vmem:[%s234 + $0x148] sm:$0xff]
        %v316 = vld [vmem:[%s234 + $0x150] sm:$0xff]
        %v317 = vld [vmem:[%s234 + $0x158] sm:$0xff]
        %v318 = vld [vmem:[%s234 + $0x160] sm:$0xff]
        %v319 = vld [vmem:[%s234 + $0x168] sm:$0xff]
        %v320 = vld [vmem:[%s234 + $0x170] sm:$0xff]
        %v321 = vld [vmem:[%s234 + $0x178] sm:$0xff]
        %v322 = vld [vmem:[%s234 + $0x180] sm:$0xff]
        %v323 = vld [vmem:[%s234 + $0x188] sm:$0xff]
        %v324 = vld [vmem:[%s234 + $0x190] sm:$0xff]
        %v325 = vld [vmem:[%s234 + $0x198] sm:$0xff]
        %v326 = vld [vmem:[%s234 + $0x1a0] sm:$0xff]
        %v327 = vld [vmem:[%s234 + $0x1a8] sm:$0xff]
        %v328 = vld [vmem:[%s234 + $0x1b0] sm:$0xff]
        %v329 = vld [vmem:[%s234 + $0x1b8] sm:$0xff]
        %v330 = vld [vmem:[%s234 + $0x1c0] sm:$0xff]
        %v331 = vld [vmem:[%s234 + $0x1c8] sm:$0xff]
        %v332 = vld [vmem:[%s234 + $0x1d0] sm:$0xff]
        %v333 = vld [vmem:[%s234 + $0x1d8] sm:$0xff]
        %v334 = vld [vmem:[%s234 + $0x1e0] sm:$0xff]
        %v335 = vld [vmem:[%s234 + $0x1e8] sm:$0xff]
        %v336 = vld [vmem:[%s234 + $0x1f0] sm:$0xff]
        %v337 = vld [vmem:[%s234 + $0x1f8] sm:$0xff]
        %v338 = vpack.c.bf16 %v276, %v274
        %v339 = vpack.c.bf16 %v277, %v275
        %v340 = vpack.c.bf16 %v280, %v278
        %v341 = vpack.c.bf16 %v281, %v279
        %v342 = vpack.c.bf16 %v284, %v282
        %v343 = vpack.c.bf16 %v285, %v283
        %v344 = vpack.c.bf16 %v288, %v286
        %v345 = vpack.c.bf16 %v289, %v287
        %v346 = vpack.c.bf16 %v292, %v290
        %v347 = vpack.c.bf16 %v293, %v291
        %v348 = vpack.c.bf16 %v296, %v294
        %v349 = vpack.c.bf16 %v297, %v295
        %v350 = vpack.c.bf16 %v300, %v298
        %v351 = vpack.c.bf16 %v301, %v299
        %v352 = vpack.c.bf16 %v304, %v302
        %v353 = vpack.c.bf16 %v305, %v303
        %v354 = vpack.c.bf16 %v308, %v306
        %v355 = vpack.c.bf16 %v309, %v307
        %v356 = vpack.c.bf16 %v312, %v310
        %v357 = vpack.c.bf16 %v313, %v311
        %v358 = vpack.c.bf16 %v316, %v314
        %v359 = vpack.c.bf16 %v317, %v315
        %v360 = vpack.c.bf16 %v320, %v318
        %v361 = vpack.c.bf16 %v321, %v319
        %v362 = vpack.c.bf16 %v324, %v322
        %v363 = vpack.c.bf16 %v325, %v323
        %v364 = vpack.c.bf16 %v328, %v326
        %v365 = vpack.c.bf16 %v329, %v327
        %v366 = vpack.c.bf16 %v332, %v330
        %v367 = vpack.c.bf16 %v333, %v331
        %v368 = vpack.c.bf16 %v336, %v334
        %v369 = vpack.c.bf16 %v337, %v335
        %v370 = vld [vmem:[#allocation5] sm:$0xff]
        %v371 = vld [vmem:[#allocation5 + $0x8] sm:$0xff]
        %v372 = vld [vmem:[#allocation5 + $0x10] sm:$0xff]
        %v373 = vld [vmem:[#allocation5 + $0x18] sm:$0xff]
        %v374 = vld [vmem:[#allocation5 + $0x20] sm:$0xff]
        %v375 = vld [vmem:[#allocation5 + $0x28] sm:$0xff]
        %v376 = vld [vmem:[#allocation5 + $0x30] sm:$0xff]
        %v377 = vld [vmem:[#allocation5 + $0x38] sm:$0xff]
        %v378 = vld [vmem:[#allocation5 + $0x40] sm:$0xff]
        %v379 = vld [vmem:[#allocation5 + $0x48] sm:$0xff]
        %v380 = vld [vmem:[#allocation5 + $0x50] sm:$0xff]
        %v381 = vld [vmem:[#allocation5 + $0x58] sm:$0xff]
        %v382 = vld [vmem:[#allocation5 + $0x60] sm:$0xff]
        %v383 = vld [vmem:[#allocation5 + $0x68] sm:$0xff]
        %v384 = vld [vmem:[#allocation5 + $0x70] sm:$0xff]
        %v385 = vld [vmem:[#allocation5 + $0x78] sm:$0xff]
        %v386 = vld [vmem:[#allocation5 + $0x80] sm:$0xff]
        %v387 = vld [vmem:[#allocation5 + $0x88] sm:$0xff]
        %v388 = vld [vmem:[#allocation5 + $0x90] sm:$0xff]
        %v389 = vld [vmem:[#allocation5 + $0x98] sm:$0xff]
        %v390 = vld [vmem:[#allocation5 + $0xa0] sm:$0xff]
        %v391 = vld [vmem:[#allocation5 + $0xa8] sm:$0xff]
        %v392 = vld [vmem:[#allocation5 + $0xb0] sm:$0xff]
        %v393 = vld [vmem:[#allocation5 + $0xb8] sm:$0xff]
        %v394 = vld [vmem:[#allocation5 + $0xc0] sm:$0xff]
        %v395 = vld [vmem:[#allocation5 + $0xc8] sm:$0xff]
        %v396 = vld [vmem:[#allocation5 + $0xd0] sm:$0xff]
        %v397 = vld [vmem:[#allocation5 + $0xd8] sm:$0xff]
        %v398 = vld [vmem:[#allocation5 + $0xe0] sm:$0xff]
        %v399 = vld [vmem:[#allocation5 + $0xe8] sm:$0xff]
        %v400 = vld [vmem:[#allocation5 + $0xf0] sm:$0xff]
        %v401 = vld [vmem:[#allocation5 + $0xf8] sm:$0xff]
        %v402 = vpack.c.bf16 %v372, %v370
        %v403 = vpack.c.bf16 %v373, %v371
        %v404 = vpack.c.bf16 %v376, %v374
        %v405 = vpack.c.bf16 %v377, %v375
        %v406 = vpack.c.bf16 %v380, %v378
        %v407 = vpack.c.bf16 %v381, %v379
        %v408 = vpack.c.bf16 %v384, %v382
        %v409 = vpack.c.bf16 %v385, %v383
        %v410 = vpack.c.bf16 %v388, %v386
        %v411 = vpack.c.bf16 %v389, %v387
        %v412 = vpack.c.bf16 %v392, %v390
        %v413 = vpack.c.bf16 %v393, %v391
        %v414 = vpack.c.bf16 %v396, %v394
        %v415 = vpack.c.bf16 %v397, %v395
        %v416 = vpack.c.bf16 %v400, %v398
        %v417 = vpack.c.bf16 %v401, %v399
        %v418 = vld [vmem:[%s2] sm:$0x1]
        %v420 = vlaneseq
        %v421 = vshrl.u32 %v420, 7
        %v422 = vsub.s32 0, %v421
        %v423 = vrot.slane %v418, %v422
        %425 = vmatprep.subr.bf16.mxu0 %v403
        %426 = vmatpush1.bf16.xpose.msra.mxu0 %v402
        %427 = vmatprep.subr.bf16.mxu0 %v405
        %428 = vmatpush1.bf16.xpose.msra.mxu0 %v404
        %429 = vmatprep.subr.bf16.mxu0 %v407
        %430 = vmatpush1.bf16.xpose.msra.mxu0 %v406
        %431 = vmatprep.subr.bf16.mxu0 %v409
        %432 = vmatpush1.bf16.xpose.msra.mxu0 %v408
        %433 = vmatprep.subr.bf16.mxu0 %v411
        %434 = vmatpush1.bf16.xpose.msra.mxu0 %v410
        %435 = vmatprep.subr.bf16.mxu0 %v413
        %436 = vmatpush1.bf16.xpose.msra.mxu0 %v412
        %437 = vmatprep.subr.bf16.mxu0 %v415
        %438 = vmatpush1.bf16.xpose.msra.mxu0 %v414
        %439 = vmatprep.subr.bf16.mxu0 %v417
        %440 = vmatpush1.bf16.xpose.msra.mxu0 %v416
        %441 = vmatprep.subr.bf16.mxu0 0
        %442 = vmatpush1.bf16.xpose.msra.mxu0 0
        %443 = vmatprep.subr.bf16.mxu0 0
        %444 = vmatpush1.bf16.xpose.msra.mxu0 0
        %445 = vmatprep.subr.bf16.mxu0 0
        %446 = vmatpush1.bf16.xpose.msra.mxu0 0
        %447 = vmatprep.subr.bf16.mxu0 0
        %448 = vmatpush1.bf16.xpose.msra.mxu0 0
        %449 = vmatprep.subr.bf16.mxu0 0
        %450 = vmatpush1.bf16.xpose.msra.mxu0 0
        %451 = vmatprep.subr.bf16.mxu0 0
        %452 = vmatpush1.bf16.xpose.msra.mxu0 0
        %453 = vmatprep.subr.bf16.mxu0 0
        %454 = vmatpush1.bf16.xpose.msra.mxu0 0
        %455 = vmatprep.subr.bf16.mxu0 0
        %456 = vmatpush1.bf16.xpose.msra.mxu0 0
        %457 = vmatprep.mubr.bf16.mxu0 %v339
        %458 = vmatmul.mubr.bf16.gmra.mrb[0].mxu0 %v338
        %v459 = vpop.f32.mrb[0].mxu0
        %v460 = vadd.f32 %v423, %v459
        %v461 = vpop.f32.mrb[0].mxu0
        %v462 = vpop.f32.mrb[0].mxu0
        %v463 = vadd.f32 %v423, %v462
        %v464 = vpop.f32.mrb[0].mxu0
        %465 = vmatprep.mubr.bf16.mxu0 %v341
        %466 = vmatmul.mubr.bf16.gmra.mrb[0].mxu0 %v340
        %v467 = vpop.f32.mrb[0].mxu0
        %v468 = vadd.f32 %v423, %v467
        %v469 = vpop.f32.mrb[0].mxu0
        %v470 = vpop.f32.mrb[0].mxu0
        %v471 = vadd.f32 %v423, %v470
        %v472 = vpop.f32.mrb[0].mxu0
        %473 = vmatprep.mubr.bf16.mxu0 %v343
        %474 = vmatmul.mubr.bf16.gmra.mrb[0].mxu0 %v342
        %v475 = vpop.f32.mrb[0].mxu0
        %v476 = vadd.f32 %v423, %v475
        %v477 = vpop.f32.mrb[0].mxu0
        %v478 = vpop.f32.mrb[0].mxu0
        %v479 = vadd.f32 %v423, %v478
        %v480 = vpop.f32.mrb[0].mxu0
        %481 = vmatprep.mubr.bf16.mxu0 %v345
        %482 = vmatmul.mubr.bf16.gmra.mrb[0].mxu0 %v344
        %v483 = vpop.f32.mrb[0].mxu0
        %v484 = vadd.f32 %v423, %v483
        %v485 = vpop.f32.mrb[0].mxu0
        %v486 = vpop.f32.mrb[0].mxu0
        %v487 = vadd.f32 %v423, %v486
        %v488 = vpop.f32.mrb[0].mxu0
        %489 = vmatprep.mubr.bf16.mxu0 %v347
        %490 = vmatmul.mubr.bf16.gmra.mrb[0].mxu0 %v346
        %v491 = vpop.f32.mrb[0].mxu0
        %v492 = vadd.f32 %v423, %v491
        %v493 = vpop.f32.mrb[0].mxu0
        %v494 = vpop.f32.mrb[0].mxu0
        %v495 = vadd.f32 %v423, %v494
        %v496 = vpop.f32.mrb[0].mxu0
        %497 = vmatprep.mubr.bf16.mxu0 %v349
        %498 = vmatmul.mubr.bf16.gmra.mrb[0].mxu0 %v348
        %v499 = vpop.f32.mrb[0].mxu0
        %v500 = vadd.f32 %v423, %v499
        %v501 = vpop.f32.mrb[0].mxu0
        %v502 = vpop.f32.mrb[0].mxu0
        %v503 = vadd.f32 %v423, %v502
        %v504 = vpop.f32.mrb[0].mxu0
        %505 = vmatprep.mubr.bf16.mxu0 %v351
        %506 = vmatmul.mubr.bf16.gmra.mrb[0].mxu0 %v350
        %v507 = vpop.f32.mrb[0].mxu0
        %v508 = vadd.f32 %v423, %v507
        %v509 = vpop.f32.mrb[0].mxu0
        %v510 = vpop.f32.mrb[0].mxu0
        %v511 = vadd.f32 %v423, %v510
        %v512 = vpop.f32.mrb[0].mxu0
        %513 = vmatprep.mubr.bf16.mxu0 %v353
        %514 = vmatmul.mubr.bf16.gmra.mrb[0].mxu0 %v352
        %v515 = vpop.f32.mrb[0].mxu0
        %v516 = vadd.f32 %v423, %v515
        %v517 = vpop.f32.mrb[0].mxu0
        %v518 = vpop.f32.mrb[0].mxu0
        %v519 = vadd.f32 %v423, %v518
        %v520 = vpop.f32.mrb[0].mxu0
        %521 = vmatprep.mubr.bf16.mxu0 %v355
        %522 = vmatmul.mubr.bf16.gmra.mrb[0].mxu0 %v354
        %v523 = vpop.f32.mrb[0].mxu0
        %v524 = vadd.f32 %v423, %v523
        %v525 = vpop.f32.mrb[0].mxu0
        %v526 = vpop.f32.mrb[0].mxu0
        %v527 = vadd.f32 %v423, %v526
        %v528 = vpop.f32.mrb[0].mxu0
        %529 = vmatprep.mubr.bf16.mxu0 %v357
        %530 = vmatmul.mubr.bf16.gmra.mrb[0].mxu0 %v356
        %v531 = vpop.f32.mrb[0].mxu0
        %v532 = vadd.f32 %v423, %v531
        %v533 = vpop.f32.mrb[0].mxu0
        %v534 = vpop.f32.mrb[0].mxu0
        %v535 = vadd.f32 %v423, %v534
        %v536 = vpop.f32.mrb[0].mxu0
        %537 = vmatprep.mubr.bf16.mxu0 %v359
        %538 = vmatmul.mubr.bf16.gmra.mrb[0].mxu0 %v358
        %v539 = vpop.f32.mrb[0].mxu0
        %v540 = vadd.f32 %v423, %v539
        %v541 = vpop.f32.mrb[0].mxu0
        %v542 = vpop.f32.mrb[0].mxu0
        %v543 = vadd.f32 %v423, %v542
        %v544 = vpop.f32.mrb[0].mxu0
        %545 = vmatprep.mubr.bf16.mxu0 %v361
        %546 = vmatmul.mubr.bf16.gmra.mrb[0].mxu0 %v360
        %v547 = vpop.f32.mrb[0].mxu0
        %v548 = vadd.f32 %v423, %v547
        %v549 = vpop.f32.mrb[0].mxu0
        %v550 = vpop.f32.mrb[0].mxu0
        %v551 = vadd.f32 %v423, %v550
        %v552 = vpop.f32.mrb[0].mxu0
        %553 = vmatprep.mubr.bf16.mxu0 %v363
        %554 = vmatmul.mubr.bf16.gmra.mrb[0].mxu0 %v362
        %v555 = vpop.f32.mrb[0].mxu0
        %v556 = vadd.f32 %v423, %v555
        %v557 = vpop.f32.mrb[0].mxu0
        %v558 = vpop.f32.mrb[0].mxu0
        %v559 = vadd.f32 %v423, %v558
        %v560 = vpop.f32.mrb[0].mxu0
        %561 = vmatprep.mubr.bf16.mxu0 %v365
        %562 = vmatmul.mubr.bf16.gmra.mrb[0].mxu0 %v364
        %v563 = vpop.f32.mrb[0].mxu0
        %v564 = vadd.f32 %v423, %v563
        %v565 = vpop.f32.mrb[0].mxu0
        %v566 = vpop.f32.mrb[0].mxu0
        %v567 = vadd.f32 %v423, %v566
        %v568 = vpop.f32.mrb[0].mxu0
        %569 = vmatprep.mubr.bf16.mxu0 %v367
        %570 = vmatmul.mubr.bf16.gmra.mrb[0].mxu0 %v366
        %v571 = vpop.f32.mrb[0].mxu0
        %v572 = vadd.f32 %v423, %v571
        %v573 = vpop.f32.mrb[0].mxu0
        %v574 = vpop.f32.mrb[0].mxu0
        %v575 = vadd.f32 %v423, %v574
        %v576 = vpop.f32.mrb[0].mxu0
        %577 = vmatprep.mubr.bf16.mxu0 %v369
        %578 = vmatmul.mubr.bf16.gmra.mrb[0].mxu0 %v368
        %v579 = vpop.f32.mrb[0].mxu0
        %v580 = vadd.f32 %v423, %v579
        %v581 = vpop.f32.mrb[0].mxu0
        %v582 = vpop.f32.mrb[0].mxu0
        %v583 = vadd.f32 %v423, %v582
        %v584 = vpop.f32.mrb[0].mxu0
        %585 = vdwg.mxu0
        %v586 = vmax.f32 %v460, 0.0
        %v587 = vmax.f32 %v463, 0.0
        %v588 = vmax.f32 %v468, 0.0
        %v589 = vmax.f32 %v471, 0.0
        %v590 = vmax.f32 %v476, 0.0
        %v591 = vmax.f32 %v479, 0.0
        %v592 = vmax.f32 %v484, 0.0
        %v593 = vmax.f32 %v487, 0.0
        %v594 = vmax.f32 %v492, 0.0
        %v595 = vmax.f32 %v495, 0.0
        %v596 = vmax.f32 %v500, 0.0
        %v597 = vmax.f32 %v503, 0.0
        %v598 = vmax.f32 %v508, 0.0
        %v599 = vmax.f32 %v511, 0.0
        %v600 = vmax.f32 %v516, 0.0
        %v601 = vmax.f32 %v519, 0.0
        %v602 = vmax.f32 %v524, 0.0
        %v603 = vmax.f32 %v527, 0.0
        %v604 = vmax.f32 %v532, 0.0
        %v605 = vmax.f32 %v535, 0.0
        %v606 = vmax.f32 %v540, 0.0
        %v607 = vmax.f32 %v543, 0.0
        %v608 = vmax.f32 %v548, 0.0
        %v609 = vmax.f32 %v551, 0.0
        %v610 = vmax.f32 %v556, 0.0
        %v611 = vmax.f32 %v559, 0.0
        %v612 = vmax.f32 %v564, 0.0
        %v613 = vmax.f32 %v567, 0.0
        %v614 = vmax.f32 %v572, 0.0
        %v615 = vmax.f32 %v575, 0.0
        %v616 = vmax.f32 %v580, 0.0
        %v617 = vmax.f32 %v583, 0.0
        %v618 = vpack.c.bf16 %v587, %v586
        %v619 = vpack.c.bf16 %v589, %v588
        %v620 = vpack.c.bf16 %v591, %v590
        %v621 = vpack.c.bf16 %v593, %v592
        %v622 = vpack.c.bf16 %v595, %v594
        %v623 = vpack.c.bf16 %v597, %v596
        %v624 = vpack.c.bf16 %v599, %v598
        %v625 = vpack.c.bf16 %v601, %v600
        %v626 = vpack.c.bf16 %v603, %v602
        %v627 = vpack.c.bf16 %v605, %v604
        %v628 = vpack.c.bf16 %v607, %v606
        %v629 = vpack.c.bf16 %v609, %v608
        %v630 = vpack.c.bf16 %v611, %v610
        %v631 = vpack.c.bf16 %v613, %v612
        %v632 = vpack.c.bf16 %v615, %v614
        %v633 = vpack.c.bf16 %v617, %v616
        %v634 = vld [vmem:[%s3] sm:$0x3]
        %v636 = vlaneseq
        %v637 = vshrl.u32 %v636, 7
        %v638 = vsub.s32 0, %v637
        %v639 = vrot.slane %v634, %v638
        %v640 = vlaneseq
        %v641 = vshrl.u32 %v640, 7
        %v642 = vsub.s32 1, %v641
        %v643 = vrot.slane %v634, %v642
        %646 = vmatprep.subr.bf16.mxu0 %v403
        %647 = vmatpush1.bf16.msra.mxu0 %v402
        %648 = vmatprep.subr.bf16.mxu0 %v405
        %649 = vmatpush1.bf16.msra.mxu0 %v404
        %650 = vmatprep.subr.bf16.mxu0 %v407
        %651 = vmatpush1.bf16.msra.mxu0 %v406
        %652 = vmatprep.subr.bf16.mxu0 %v409
        %653 = vmatpush1.bf16.msra.mxu0 %v408
        %654 = vmatprep.subr.bf16.mxu0 %v411
        %655 = vmatpush1.bf16.msra.mxu0 %v410
        %656 = vmatprep.subr.bf16.mxu0 %v413
        %657 = vmatpush1.bf16.msra.mxu0 %v412
        %658 = vmatprep.subr.bf16.mxu0 %v415
        %659 = vmatpush1.bf16.msra.mxu0 %v414
        %660 = vmatprep.subr.bf16.mxu0 %v417
        %661 = vmatpush1.bf16.msra.mxu0 %v416
        %662 = vmatprep.subr.bf16.mxu0 0
        %663 = vmatpush1.bf16.msra.mxu0 0
        %664 = vmatprep.subr.bf16.mxu0 0
        %665 = vmatpush1.bf16.msra.mxu0 0
        %666 = vmatprep.subr.bf16.mxu0 0
        %667 = vmatpush1.bf16.msra.mxu0 0
        %668 = vmatprep.subr.bf16.mxu0 0
        %669 = vmatpush1.bf16.msra.mxu0 0
        %670 = vmatprep.subr.bf16.mxu0 0
        %671 = vmatpush1.bf16.msra.mxu0 0
        %672 = vmatprep.subr.bf16.mxu0 0
        %673 = vmatpush1.bf16.msra.mxu0 0
        %674 = vmatprep.subr.bf16.mxu0 0
        %675 = vmatpush1.bf16.msra.mxu0 0
        %676 = vmatprep.subr.bf16.mxu0 0
        %677 = vmatpush1.bf16.msra.mxu0 0
        %678 = vmatprep.mubr.bf16.mxu0 0
        %679 = vmatmul.mubr.bf16.gmra.mrb[0].mxu0 %v618
        %v680 = vpop.f32.mrb[0].mxu0
        %v681 = vadd.f32 %v639, %v680
        %v682 = vpop.f32.mrb[0].mxu0
        %v683 = vadd.f32 %v643, %v682
        %v684 = vpop.f32.mrb[0].mxu0
        %v685 = vadd.f32 %v639, %v684
        %v686 = vpop.f32.mrb[0].mxu0
        %v687 = vadd.f32 %v643, %v686
        %688 = vmatprep.mubr.bf16.mxu0 0
        %689 = vmatmul.mubr.bf16.gmra.mrb[0].mxu0 %v619
        %v690 = vpop.f32.mrb[0].mxu0
        %v691 = vadd.f32 %v639, %v690
        %v692 = vpop.f32.mrb[0].mxu0
        %v693 = vadd.f32 %v643, %v692
        %v694 = vpop.f32.mrb[0].mxu0
        %v695 = vadd.f32 %v639, %v694
        %v696 = vpop.f32.mrb[0].mxu0
        %v697 = vadd.f32 %v643, %v696
        %698 = vmatprep.mubr.bf16.mxu0 0
        %699 = vmatmul.mubr.bf16.gmra.mrb[0].mxu0 %v620
        %v700 = vpop.f32.mrb[0].mxu0
        %v701 = vadd.f32 %v639, %v700
        %v702 = vpop.f32.mrb[0].mxu0
        %v703 = vadd.f32 %v643, %v702
        %v704 = vpop.f32.mrb[0].mxu0
        %v705 = vadd.f32 %v639, %v704
        %v706 = vpop.f32.mrb[0].mxu0
        %v707 = vadd.f32 %v643, %v706
        %708 = vmatprep.mubr.bf16.mxu0 0
        %709 = vmatmul.mubr.bf16.gmra.mrb[0].mxu0 %v621
        %v710 = vpop.f32.mrb[0].mxu0
        %v711 = vadd.f32 %v639, %v710
        %v712 = vpop.f32.mrb[0].mxu0
        %v713 = vadd.f32 %v643, %v712
        %v714 = vpop.f32.mrb[0].mxu0
        %v715 = vadd.f32 %v639, %v714
        %v716 = vpop.f32.mrb[0].mxu0
        %v717 = vadd.f32 %v643, %v716
        %718 = vmatprep.mubr.bf16.mxu0 0
        %719 = vmatmul.mubr.bf16.gmra.mrb[0].mxu0 %v622
        %v720 = vpop.f32.mrb[0].mxu0
        %v721 = vadd.f32 %v639, %v720
        %v722 = vpop.f32.mrb[0].mxu0
        %v723 = vadd.f32 %v643, %v722
        %v724 = vpop.f32.mrb[0].mxu0
        %v725 = vadd.f32 %v639, %v724
        %v726 = vpop.f32.mrb[0].mxu0
        %v727 = vadd.f32 %v643, %v726
        %728 = vmatprep.mubr.bf16.mxu0 0
        %729 = vmatmul.mubr.bf16.gmra.mrb[0].mxu0 %v623
        %v730 = vpop.f32.mrb[0].mxu0
        %v731 = vadd.f32 %v639, %v730
        %v732 = vpop.f32.mrb[0].mxu0
        %v733 = vadd.f32 %v643, %v732
        %v734 = vpop.f32.mrb[0].mxu0
        %v735 = vadd.f32 %v639, %v734
        %v736 = vpop.f32.mrb[0].mxu0
        %v737 = vadd.f32 %v643, %v736
        %738 = vmatprep.mubr.bf16.mxu0 0
        %739 = vmatmul.mubr.bf16.gmra.mrb[0].mxu0 %v624
        %v740 = vpop.f32.mrb[0].mxu0
        %v741 = vadd.f32 %v639, %v740
        %v742 = vpop.f32.mrb[0].mxu0
        %v743 = vadd.f32 %v643, %v742
        %v744 = vpop.f32.mrb[0].mxu0
        %v745 = vadd.f32 %v639, %v744
        %v746 = vpop.f32.mrb[0].mxu0
        %v747 = vadd.f32 %v643, %v746
        %748 = vmatprep.mubr.bf16.mxu0 0
        %749 = vmatmul.mubr.bf16.gmra.mrb[0].mxu0 %v625
        %v750 = vpop.f32.mrb[0].mxu0
        %v751 = vadd.f32 %v639, %v750
        %v752 = vpop.f32.mrb[0].mxu0
        %v753 = vadd.f32 %v643, %v752
        %v754 = vpop.f32.mrb[0].mxu0
        %v755 = vadd.f32 %v639, %v754
        %v756 = vpop.f32.mrb[0].mxu0
        %v757 = vadd.f32 %v643, %v756
        %758 = vmatprep.mubr.bf16.mxu0 0
        %759 = vmatmul.mubr.bf16.gmra.mrb[0].mxu0 %v626
        %v760 = vpop.f32.mrb[0].mxu0
        %v761 = vadd.f32 %v639, %v760
        %v762 = vpop.f32.mrb[0].mxu0
        %v763 = vadd.f32 %v643, %v762
        %v764 = vpop.f32.mrb[0].mxu0
        %v765 = vadd.f32 %v639, %v764
        %v766 = vpop.f32.mrb[0].mxu0
        %v767 = vadd.f32 %v643, %v766
        %768 = vmatprep.mubr.bf16.mxu0 0
        %769 = vmatmul.mubr.bf16.gmra.mrb[0].mxu0 %v627
        %v770 = vpop.f32.mrb[0].mxu0
        %v771 = vadd.f32 %v639, %v770
        %v772 = vpop.f32.mrb[0].mxu0
        %v773 = vadd.f32 %v643, %v772
        %v774 = vpop.f32.mrb[0].mxu0
        %v775 = vadd.f32 %v639, %v774
        %v776 = vpop.f32.mrb[0].mxu0
        %v777 = vadd.f32 %v643, %v776
        %778 = vmatprep.mubr.bf16.mxu0 0
        %779 = vmatmul.mubr.bf16.gmra.mrb[0].mxu0 %v628
        %v780 = vpop.f32.mrb[0].mxu0
        %v781 = vadd.f32 %v639, %v780
        %v782 = vpop.f32.mrb[0].mxu0
        %v783 = vadd.f32 %v643, %v782
        %v784 = vpop.f32.mrb[0].mxu0
        %v785 = vadd.f32 %v639, %v784
        %v786 = vpop.f32.mrb[0].mxu0
        %v787 = vadd.f32 %v643, %v786
        %788 = vmatprep.mubr.bf16.mxu0 0
        %789 = vmatmul.mubr.bf16.gmra.mrb[0].mxu0 %v629
        %v790 = vpop.f32.mrb[0].mxu0
        %v791 = vadd.f32 %v639, %v790
        %v792 = vpop.f32.mrb[0].mxu0
        %v793 = vadd.f32 %v643, %v792
        %v794 = vpop.f32.mrb[0].mxu0
        %v795 = vadd.f32 %v639, %v794
        %v796 = vpop.f32.mrb[0].mxu0
        %v797 = vadd.f32 %v643, %v796
        %798 = vmatprep.mubr.bf16.mxu0 0
        %799 = vmatmul.mubr.bf16.gmra.mrb[0].mxu0 %v630
        %v800 = vpop.f32.mrb[0].mxu0
        %v801 = vadd.f32 %v639, %v800
        %v802 = vpop.f32.mrb[0].mxu0
        %v803 = vadd.f32 %v643, %v802
        %v804 = vpop.f32.mrb[0].mxu0
        %v805 = vadd.f32 %v639, %v804
        %v806 = vpop.f32.mrb[0].mxu0
        %v807 = vadd.f32 %v643, %v806
        %808 = vmatprep.mubr.bf16.mxu0 0
        %809 = vmatmul.mubr.bf16.gmra.mrb[0].mxu0 %v631
        %v810 = vpop.f32.mrb[0].mxu0
        %v811 = vadd.f32 %v639, %v810
        %v812 = vpop.f32.mrb[0].mxu0
        %v813 = vadd.f32 %v643, %v812
        %v814 = vpop.f32.mrb[0].mxu0
        %v815 = vadd.f32 %v639, %v814
        %v816 = vpop.f32.mrb[0].mxu0
        %v817 = vadd.f32 %v643, %v816
        %818 = vmatprep.mubr.bf16.mxu0 0
        %819 = vmatmul.mubr.bf16.gmra.mrb[0].mxu0 %v632
        %v820 = vpop.f32.mrb[0].mxu0
        %v821 = vadd.f32 %v639, %v820
        %v822 = vpop.f32.mrb[0].mxu0
        %v823 = vadd.f32 %v643, %v822
        %v824 = vpop.f32.mrb[0].mxu0
        %v825 = vadd.f32 %v639, %v824
        %v826 = vpop.f32.mrb[0].mxu0
        %v827 = vadd.f32 %v643, %v826
        %828 = vmatprep.mubr.bf16.mxu0 0
        %829 = vmatmul.mubr.bf16.gmra.mrb[0].mxu0 %v633
        %v830 = vpop.f32.mrb[0].mxu0
        %v831 = vadd.f32 %v639, %v830
        %v832 = vpop.f32.mrb[0].mxu0
        %v833 = vadd.f32 %v643, %v832
        %v834 = vpop.f32.mrb[0].mxu0
        %v835 = vadd.f32 %v639, %v834
        %v836 = vpop.f32.mrb[0].mxu0
        %v837 = vadd.f32 %v643, %v836
        %838 = vdwg.mxu0
        %v839 = vxor.u32 %v681, 2147483648
        %v840 = vxor.u32 %v683, 2147483648
        %v841 = vxor.u32 %v685, 2147483648
        %v842 = vxor.u32 %v687, 2147483648
        %v843 = vxor.u32 %v691, 2147483648
        %v844 = vxor.u32 %v693, 2147483648
        %v845 = vxor.u32 %v695, 2147483648
        %v846 = vxor.u32 %v697, 2147483648
        %v847 = vxor.u32 %v701, 2147483648
        %v848 = vxor.u32 %v703, 2147483648
        %v849 = vxor.u32 %v705, 2147483648
        %v850 = vxor.u32 %v707, 2147483648
        %v851 = vxor.u32 %v711, 2147483648
        %v852 = vxor.u32 %v713, 2147483648
        %v853 = vxor.u32 %v715, 2147483648
        %v854 = vxor.u32 %v717, 2147483648
        %v855 = vxor.u32 %v721, 2147483648
        %v856 = vxor.u32 %v723, 2147483648
        %v857 = vxor.u32 %v725, 2147483648
        %v858 = vxor.u32 %v727, 2147483648
        %v859 = vxor.u32 %v731, 2147483648
        %v860 = vxor.u32 %v733, 2147483648
        %v861 = vxor.u32 %v735, 2147483648
        %v862 = vxor.u32 %v737, 2147483648
        %v863 = vxor.u32 %v741, 2147483648
        %v864 = vxor.u32 %v743, 2147483648
        %v865 = vxor.u32 %v745, 2147483648
        %v866 = vxor.u32 %v747, 2147483648
        %v867 = vxor.u32 %v751, 2147483648
        %v868 = vxor.u32 %v753, 2147483648
        %v869 = vxor.u32 %v755, 2147483648
        %v870 = vxor.u32 %v757, 2147483648
        %v871 = vxor.u32 %v761, 2147483648
        %v872 = vxor.u32 %v763, 2147483648
        %v873 = vxor.u32 %v765, 2147483648
        %v874 = vxor.u32 %v767, 2147483648
        %v875 = vxor.u32 %v771, 2147483648
        %v876 = vxor.u32 %v773, 2147483648
        %v877 = vxor.u32 %v775, 2147483648
        %v878 = vxor.u32 %v777, 2147483648
        %v879 = vxor.u32 %v781, 2147483648
        %v880 = vxor.u32 %v783, 2147483648
        %v881 = vxor.u32 %v785, 2147483648
        %v882 = vxor.u32 %v787, 2147483648
        %v883 = vxor.u32 %v791, 2147483648
        %v884 = vxor.u32 %v793, 2147483648
        %v885 = vxor.u32 %v795, 2147483648
        %v886 = vxor.u32 %v797, 2147483648
        %v887 = vxor.u32 %v801, 2147483648
        %v888 = vxor.u32 %v803, 2147483648
        %v889 = vxor.u32 %v805, 2147483648
        %v890 = vxor.u32 %v807, 2147483648
        %v891 = vxor.u32 %v811, 2147483648
        %v892 = vxor.u32 %v813, 2147483648
        %v893 = vxor.u32 %v815, 2147483648
        %v894 = vxor.u32 %v817, 2147483648
        %v895 = vxor.u32 %v821, 2147483648
        %v896 = vxor.u32 %v823, 2147483648
        %v897 = vxor.u32 %v825, 2147483648
        %v898 = vxor.u32 %v827, 2147483648
        %v899 = vxor.u32 %v831, 2147483648
        %v900 = vxor.u32 %v833, 2147483648
        %v901 = vxor.u32 %v835, 2147483648
        %v902 = vxor.u32 %v837, 2147483648
        %v903 = vmul.f32 %v839, 1.442695
        %v904 = vpow.pop %v903
        %v905 = vmul.f32 %v840, 1.442695
        %v906 = vpow.pop %v905
        %v907 = vmul.f32 %v841, 1.442695
        %v908 = vpow.pop %v907
        %v909 = vmul.f32 %v842, 1.442695
        %v910 = vpow.pop %v909
        %v911 = vmul.f32 %v843, 1.442695
        %v912 = vpow.pop %v911
        %v913 = vmul.f32 %v844, 1.442695
        %v914 = vpow.pop %v913
        %v915 = vmul.f32 %v845, 1.442695
        %v916 = vpow.pop %v915
        %v917 = vmul.f32 %v846, 1.442695
        %v918 = vpow.pop %v917
        %v919 = vmul.f32 %v847, 1.442695
        %v920 = vpow.pop %v919
        %v921 = vmul.f32 %v848, 1.442695
        %v922 = vpow.pop %v921
        %v923 = vmul.f32 %v849, 1.442695
        %v924 = vpow.pop %v923
        %v925 = vmul.f32 %v850, 1.442695
        %v926 = vpow.pop %v925
        %v927 = vmul.f32 %v851, 1.442695
        %v928 = vpow.pop %v927
        %v929 = vmul.f32 %v852, 1.442695
        %v930 = vpow.pop %v929
        %v931 = vmul.f32 %v853, 1.442695
        %v932 = vpow.pop %v931
        %v933 = vmul.f32 %v854, 1.442695
        %v934 = vpow.pop %v933
        %v935 = vmul.f32 %v855, 1.442695
        %v936 = vpow.pop %v935
        %v937 = vmul.f32 %v856, 1.442695
        %v938 = vpow.pop %v937
        %v939 = vmul.f32 %v857, 1.442695
        %v940 = vpow.pop %v939
        %v941 = vmul.f32 %v858, 1.442695
        %v942 = vpow.pop %v941
        %v943 = vmul.f32 %v859, 1.442695
        %v944 = vpow.pop %v943
        %v945 = vmul.f32 %v860, 1.442695
        %v946 = vpow.pop %v945
        %v947 = vmul.f32 %v861, 1.442695
        %v948 = vpow.pop %v947
        %v949 = vmul.f32 %v862, 1.442695
        %v950 = vpow.pop %v949
        %v951 = vmul.f32 %v863, 1.442695
        %v952 = vpow.pop %v951
        %v953 = vmul.f32 %v864, 1.442695
        %v954 = vpow.pop %v953
        %v955 = vmul.f32 %v865, 1.442695
        %v956 = vpow.pop %v955
        %v957 = vmul.f32 %v866, 1.442695
        %v958 = vpow.pop %v957
        %v959 = vmul.f32 %v867, 1.442695
        %v960 = vpow.pop %v959
        %v961 = vmul.f32 %v868, 1.442695
        %v962 = vpow.pop %v961
        %v963 = vmul.f32 %v869, 1.442695
        %v964 = vpow.pop %v963
        %v965 = vmul.f32 %v870, 1.442695
        %v966 = vpow.pop %v965
        %v967 = vmul.f32 %v871, 1.442695
        %v968 = vpow.pop %v967
        %v969 = vmul.f32 %v872, 1.442695
        %v970 = vpow.pop %v969
        %v971 = vmul.f32 %v873, 1.442695
        %v972 = vpow.pop %v971
        %v973 = vmul.f32 %v874, 1.442695
        %v974 = vpow.pop %v973
        %v975 = vmul.f32 %v875, 1.442695
        %v976 = vpow.pop %v975
        %v977 = vmul.f32 %v876, 1.442695
        %v978 = vpow.pop %v977
        %v979 = vmul.f32 %v877, 1.442695
        %v980 = vpow.pop %v979
        %v981 = vmul.f32 %v878, 1.442695
        %v982 = vpow.pop %v981
        %v983 = vmul.f32 %v879, 1.442695
        %v984 = vpow.pop %v983
        %v985 = vmul.f32 %v880, 1.442695
        %v986 = vpow.pop %v985
        %v987 = vmul.f32 %v881, 1.442695
        %v988 = vpow.pop %v987
        %v989 = vmul.f32 %v882, 1.442695
        %v990 = vpow.pop %v989
        %v991 = vmul.f32 %v883, 1.442695
        %v992 = vpow.pop %v991
        %v993 = vmul.f32 %v884, 1.442695
        %v994 = vpow.pop %v993
        %v995 = vmul.f32 %v885, 1.442695
        %v996 = vpow.pop %v995
        %v997 = vmul.f32 %v886, 1.442695
        %v998 = vpow.pop %v997
        %v999 = vmul.f32 %v887, 1.442695
        %v1000 = vpow.pop %v999
        %v1001 = vmul.f32 %v888, 1.442695
        %v1002 = vpow.pop %v1001
        %v1003 = vmul.f32 %v889, 1.442695
        %v1004 = vpow.pop %v1003
        %v1005 = vmul.f32 %v890, 1.442695
        %v1006 = vpow.pop %v1005
        %v1007 = vmul.f32 %v891, 1.442695
        %v1008 = vpow.pop %v1007
        %v1009 = vmul.f32 %v892, 1.442695
        %v1010 = vpow.pop %v1009
        %v1011 = vmul.f32 %v893, 1.442695
        %v1012 = vpow.pop %v1011
        %v1013 = vmul.f32 %v894, 1.442695
        %v1014 = vpow.pop %v1013
        %v1015 = vmul.f32 %v895, 1.442695
        %v1016 = vpow.pop %v1015
        %v1017 = vmul.f32 %v896, 1.442695
        %v1018 = vpow.pop %v1017
        %v1019 = vmul.f32 %v897, 1.442695
        %v1020 = vpow.pop %v1019
        %v1021 = vmul.f32 %v898, 1.442695
        %v1022 = vpow.pop %v1021
        %v1023 = vmul.f32 %v899, 1.442695
        %v1024 = vpow.pop %v1023
        %v1025 = vmul.f32 %v900, 1.442695
        %v1026 = vpow.pop %v1025
        %v1027 = vmul.f32 %v901, 1.442695
        %v1028 = vpow.pop %v1027
        %v1029 = vmul.f32 %v902, 1.442695
        %v1030 = vpow.pop %v1029
        %v1031 = vadd.f32 %v904, 1.0
        %v1032 = vadd.f32 %v906, 1.0
        %v1033 = vadd.f32 %v908, 1.0
        %v1034 = vadd.f32 %v910, 1.0
        %v1035 = vadd.f32 %v912, 1.0
        %v1036 = vadd.f32 %v914, 1.0
        %v1037 = vadd.f32 %v916, 1.0
        %v1038 = vadd.f32 %v918, 1.0
        %v1039 = vadd.f32 %v920, 1.0
        %v1040 = vadd.f32 %v922, 1.0
        %v1041 = vadd.f32 %v924, 1.0
        %v1042 = vadd.f32 %v926, 1.0
        %v1043 = vadd.f32 %v928, 1.0
        %v1044 = vadd.f32 %v930, 1.0
        %v1045 = vadd.f32 %v932, 1.0
        %v1046 = vadd.f32 %v934, 1.0
        %v1047 = vadd.f32 %v936, 1.0
        %v1048 = vadd.f32 %v938, 1.0
        %v1049 = vadd.f32 %v940, 1.0
        %v1050 = vadd.f32 %v942, 1.0
        %v1051 = vadd.f32 %v944, 1.0
        %v1052 = vadd.f32 %v946, 1.0
        %v1053 = vadd.f32 %v948, 1.0
        %v1054 = vadd.f32 %v950, 1.0
        %v1055 = vadd.f32 %v952, 1.0
        %v1056 = vadd.f32 %v954, 1.0
        %v1057 = vadd.f32 %v956, 1.0
        %v1058 = vadd.f32 %v958, 1.0
        %v1059 = vadd.f32 %v960, 1.0
        %v1060 = vadd.f32 %v962, 1.0
        %v1061 = vadd.f32 %v964, 1.0
        %v1062 = vadd.f32 %v966, 1.0
        %v1063 = vadd.f32 %v968, 1.0
        %v1064 = vadd.f32 %v970, 1.0
        %v1065 = vadd.f32 %v972, 1.0
        %v1066 = vadd.f32 %v974, 1.0
        %v1067 = vadd.f32 %v976, 1.0
        %v1068 = vadd.f32 %v978, 1.0
        %v1069 = vadd.f32 %v980, 1.0
        %v1070 = vadd.f32 %v982, 1.0
        %v1071 = vadd.f32 %v984, 1.0
        %v1072 = vadd.f32 %v986, 1.0
        %v1073 = vadd.f32 %v988, 1.0
        %v1074 = vadd.f32 %v990, 1.0
        %v1075 = vadd.f32 %v992, 1.0
        %v1076 = vadd.f32 %v994, 1.0
        %v1077 = vadd.f32 %v996, 1.0
        %v1078 = vadd.f32 %v998, 1.0
        %v1079 = vadd.f32 %v1000, 1.0
        %v1080 = vadd.f32 %v1002, 1.0
        %v1081 = vadd.f32 %v1004, 1.0
        %v1082 = vadd.f32 %v1006, 1.0
        %v1083 = vadd.f32 %v1008, 1.0
        %v1084 = vadd.f32 %v1010, 1.0
        %v1085 = vadd.f32 %v1012, 1.0
        %v1086 = vadd.f32 %v1014, 1.0
        %v1087 = vadd.f32 %v1016, 1.0
        %v1088 = vadd.f32 %v1018, 1.0
        %v1089 = vadd.f32 %v1020, 1.0
        %v1090 = vadd.f32 %v1022, 1.0
        %v1091 = vadd.f32 %v1024, 1.0
        %v1092 = vadd.f32 %v1026, 1.0
        %v1093 = vadd.f32 %v1028, 1.0
        %v1094 = vadd.f32 %v1030, 1.0
        %v1095 = vrcp.pop %v1031
        %v1096 = vmul.f32 1.0, %v1095
        %v1097 = vrcp.pop %v1032
        %v1098 = vmul.f32 1.0, %v1097
        %v1099 = vrcp.pop %v1033
        %v1100 = vmul.f32 1.0, %v1099
        %v1101 = vrcp.pop %v1034
        %v1102 = vmul.f32 1.0, %v1101
        %v1103 = vrcp.pop %v1035
        %v1104 = vmul.f32 1.0, %v1103
        %v1105 = vrcp.pop %v1036
        %v1106 = vmul.f32 1.0, %v1105
        %v1107 = vrcp.pop %v1037
        %v1108 = vmul.f32 1.0, %v1107
        %v1109 = vrcp.pop %v1038
        %v1110 = vmul.f32 1.0, %v1109
        %v1111 = vrcp.pop %v1039
        %v1112 = vmul.f32 1.0, %v1111
        %v1113 = vrcp.pop %v1040
        %v1114 = vmul.f32 1.0, %v1113
        %v1115 = vrcp.pop %v1041
        %v1116 = vmul.f32 1.0, %v1115
        %v1117 = vrcp.pop %v1042
        %v1118 = vmul.f32 1.0, %v1117
        %v1119 = vrcp.pop %v1043
        %v1120 = vmul.f32 1.0, %v1119
        %v1121 = vrcp.pop %v1044
        %v1122 = vmul.f32 1.0, %v1121
        %v1123 = vrcp.pop %v1045
        %v1124 = vmul.f32 1.0, %v1123
        %v1125 = vrcp.pop %v1046
        %v1126 = vmul.f32 1.0, %v1125
        %v1127 = vrcp.pop %v1047
        %v1128 = vmul.f32 1.0, %v1127
        %v1129 = vrcp.pop %v1048
        %v1130 = vmul.f32 1.0, %v1129
        %v1131 = vrcp.pop %v1049
        %v1132 = vmul.f32 1.0, %v1131
        %v1133 = vrcp.pop %v1050
        %v1134 = vmul.f32 1.0, %v1133
        %v1135 = vrcp.pop %v1051
        %v1136 = vmul.f32 1.0, %v1135
        %v1137 = vrcp.pop %v1052
        %v1138 = vmul.f32 1.0, %v1137
        %v1139 = vrcp.pop %v1053
        %v1140 = vmul.f32 1.0, %v1139
        %v1141 = vrcp.pop %v1054
        %v1142 = vmul.f32 1.0, %v1141
        %v1143 = vrcp.pop %v1055
        %v1144 = vmul.f32 1.0, %v1143
        %v1145 = vrcp.pop %v1056
        %v1146 = vmul.f32 1.0, %v1145
        %v1147 = vrcp.pop %v1057
        %v1148 = vmul.f32 1.0, %v1147
        %v1149 = vrcp.pop %v1058
        %v1150 = vmul.f32 1.0, %v1149
        %v1151 = vrcp.pop %v1059
        %v1152 = vmul.f32 1.0, %v1151
        %v1153 = vrcp.pop %v1060
        %v1154 = vmul.f32 1.0, %v1153
        %v1155 = vrcp.pop %v1061
        %v1156 = vmul.f32 1.0, %v1155
        %v1157 = vrcp.pop %v1062
        %v1158 = vmul.f32 1.0, %v1157
        %v1159 = vrcp.pop %v1063
        %v1160 = vmul.f32 1.0, %v1159
        %v1161 = vrcp.pop %v1064
        %v1162 = vmul.f32 1.0, %v1161
        %v1163 = vrcp.pop %v1065
        %v1164 = vmul.f32 1.0, %v1163
        %v1165 = vrcp.pop %v1066
        %v1166 = vmul.f32 1.0, %v1165
        %v1167 = vrcp.pop %v1067
        %v1168 = vmul.f32 1.0, %v1167
        %v1169 = vrcp.pop %v1068
        %v1170 = vmul.f32 1.0, %v1169
        %v1171 = vrcp.pop %v1069
        %v1172 = vmul.f32 1.0, %v1171
        %v1173 = vrcp.pop %v1070
        %v1174 = vmul.f32 1.0, %v1173
        %v1175 = vrcp.pop %v1071
        %v1176 = vmul.f32 1.0, %v1175
        %v1177 = vrcp.pop %v1072
        %v1178 = vmul.f32 1.0, %v1177
        %v1179 = vrcp.pop %v1073
        %v1180 = vmul.f32 1.0, %v1179
        %v1181 = vrcp.pop %v1074
        %v1182 = vmul.f32 1.0, %v1181
        %v1183 = vrcp.pop %v1075
        %v1184 = vmul.f32 1.0, %v1183
        %v1185 = vrcp.pop %v1076
        %v1186 = vmul.f32 1.0, %v1185
        %v1187 = vrcp.pop %v1077
        %v1188 = vmul.f32 1.0, %v1187
        %v1189 = vrcp.pop %v1078
        %v1190 = vmul.f32 1.0, %v1189
        %v1191 = vrcp.pop %v1079
        %v1192 = vmul.f32 1.0, %v1191
        %v1193 = vrcp.pop %v1080
        %v1194 = vmul.f32 1.0, %v1193
        %v1195 = vrcp.pop %v1081
        %v1196 = vmul.f32 1.0, %v1195
        %v1197 = vrcp.pop %v1082
        %v1198 = vmul.f32 1.0, %v1197
        %v1199 = vrcp.pop %v1083
        %v1200 = vmul.f32 1.0, %v1199
        %v1201 = vrcp.pop %v1084
        %v1202 = vmul.f32 1.0, %v1201
        %v1203 = vrcp.pop %v1085
        %v1204 = vmul.f32 1.0, %v1203
        %v1205 = vrcp.pop %v1086
        %v1206 = vmul.f32 1.0, %v1205
        %v1207 = vrcp.pop %v1087
        %v1208 = vmul.f32 1.0, %v1207
        %v1209 = vrcp.pop %v1088
        %v1210 = vmul.f32 1.0, %v1209
        %v1211 = vrcp.pop %v1089
        %v1212 = vmul.f32 1.0, %v1211
        %v1213 = vrcp.pop %v1090
        %v1214 = vmul.f32 1.0, %v1213
        %v1215 = vrcp.pop %v1091
        %v1216 = vmul.f32 1.0, %v1215
        %v1217 = vrcp.pop %v1092
        %v1218 = vmul.f32 1.0, %v1217
        %v1219 = vrcp.pop %v1093
        %v1220 = vmul.f32 1.0, %v1219
        %v1221 = vrcp.pop %v1094
        %v1222 = vmul.f32 1.0, %v1221
        %1223 = vst [vmem:[%s262] sm:$0xff] %v586
        %1224 = vst [vmem:[%s262 + $0x8] sm:$0xff] %v587
        %1225 = vst [vmem:[%s262 + $0x10] sm:$0xff] %v588
        %1226 = vst [vmem:[%s262 + $0x18] sm:$0xff] %v589
        %1227 = vst [vmem:[%s262 + $0x20] sm:$0xff] %v590
        %1228 = vst [vmem:[%s262 + $0x28] sm:$0xff] %v591
        %1229 = vst [vmem:[%s262 + $0x30] sm:$0xff] %v592
        %1230 = vst [vmem:[%s262 + $0x38] sm:$0xff] %v593
        %1231 = vst [vmem:[%s262 + $0x40] sm:$0xff] %v594
        %1232 = vst [vmem:[%s262 + $0x48] sm:$0xff] %v595
        %1233 = vst [vmem:[%s262 + $0x50] sm:$0xff] %v596
        %1234 = vst [vmem:[%s262 + $0x58] sm:$0xff] %v597
        %1235 = vst [vmem:[%s262 + $0x60] sm:$0xff] %v598
        %1236 = vst [vmem:[%s262 + $0x68] sm:$0xff] %v599
        %1237 = vst [vmem:[%s262 + $0x70] sm:$0xff] %v600
        %1238 = vst [vmem:[%s262 + $0x78] sm:$0xff] %v601
        %1239 = vst [vmem:[%s262 + $0x80] sm:$0xff] %v602
        %1240 = vst [vmem:[%s262 + $0x88] sm:$0xff] %v603
        %1241 = vst [vmem:[%s262 + $0x90] sm:$0xff] %v604
        %1242 = vst [vmem:[%s262 + $0x98] sm:$0xff] %v605
        %1243 = vst [vmem:[%s262 + $0xa0] sm:$0xff] %v606
        %1244 = vst [vmem:[%s262 + $0xa8] sm:$0xff] %v607
        %1245 = vst [vmem:[%s262 + $0xb0] sm:$0xff] %v608
        %1246 = vst [vmem:[%s262 + $0xb8] sm:$0xff] %v609
        %1247 = vst [vmem:[%s262 + $0xc0] sm:$0xff] %v610
        %1248 = vst [vmem:[%s262 + $0xc8] sm:$0xff] %v611
        %1249 = vst [vmem:[%s262 + $0xd0] sm:$0xff] %v612
        %1250 = vst [vmem:[%s262 + $0xd8] sm:$0xff] %v613
        %1251 = vst [vmem:[%s262 + $0xe0] sm:$0xff] %v614
        %1252 = vst [vmem:[%s262 + $0xe8] sm:$0xff] %v615
        %1253 = vst [vmem:[%s262 + $0xf0] sm:$0xff] %v616
        %1254 = vst [vmem:[%s262 + $0xf8] sm:$0xff] %v617
        %1255 = vst [vmem:[%s269] sm:$0xff] %v1096
        %1256 = vst [vmem:[%s269 + $0x8] sm:$0xff] %v1098
        %1257 = vst [vmem:[%s269 + $0x10] sm:$0xff] %v1100
        %1258 = vst [vmem:[%s269 + $0x18] sm:$0xff] %v1102
        %1259 = vst [vmem:[%s269 + $0x20] sm:$0xff] %v1104
        %1260 = vst [vmem:[%s269 + $0x28] sm:$0xff] %v1106
        %1261 = vst [vmem:[%s269 + $0x30] sm:$0xff] %v1108
        %1262 = vst [vmem:[%s269 + $0x38] sm:$0xff] %v1110
        %1263 = vst [vmem:[%s269 + $0x40] sm:$0xff] %v1112
        %1264 = vst [vmem:[%s269 + $0x48] sm:$0xff] %v1114
        %1265 = vst [vmem:[%s269 + $0x50] sm:$0xff] %v1116
        %1266 = vst [vmem:[%s269 + $0x58] sm:$0xff] %v1118
        %1267 = vst [vmem:[%s269 + $0x60] sm:$0xff] %v1120
        %1268 = vst [vmem:[%s269 + $0x68] sm:$0xff] %v1122
        %1269 = vst [vmem:[%s269 + $0x70] sm:$0xff] %v1124
        %1270 = vst [vmem:[%s269 + $0x78] sm:$0xff] %v1126
        %1271 = vst [vmem:[%s269 + $0x80] sm:$0xff] %v1128
        %1272 = vst [vmem:[%s269 + $0x88] sm:$0xff] %v1130
        %1273 = vst [vmem:[%s269 + $0x90] sm:$0xff] %v1132
        %1274 = vst [vmem:[%s269 + $0x98] sm:$0xff] %v1134
        %1275 = vst [vmem:[%s269 + $0xa0] sm:$0xff] %v1136
        %1276 = vst [vmem:[%s269 + $0xa8] sm:$0xff] %v1138
        %1277 = vst [vmem:[%s269 + $0xb0] sm:$0xff] %v1140
        %1278 = vst [vmem:[%s269 + $0xb8] sm:$0xff] %v1142
        %1279 = vst [vmem:[%s269 + $0xc0] sm:$0xff] %v1144
        %1280 = vst [vmem:[%s269 + $0xc8] sm:$0xff] %v1146
        %1281 = vst [vmem:[%s269 + $0xd0] sm:$0xff] %v1148
        %1282 = vst [vmem:[%s269 + $0xd8] sm:$0xff] %v1150
        %1283 = vst [vmem:[%s269 + $0xe0] sm:$0xff] %v1152
        %1284 = vst [vmem:[%s269 + $0xe8] sm:$0xff] %v1154
        %1285 = vst [vmem:[%s269 + $0xf0] sm:$0xff] %v1156
        %1286 = vst [vmem:[%s269 + $0xf8] sm:$0xff] %v1158
        %1287 = vst [vmem:[%s269 + $0x100] sm:$0xff] %v1160
        %1288 = vst [vmem:[%s269 + $0x108] sm:$0xff] %v1162
        %1289 = vst [vmem:[%s269 + $0x110] sm:$0xff] %v1164
        %1290 = vst [vmem:[%s269 + $0x118] sm:$0xff] %v1166
        %1291 = vst [vmem:[%s269 + $0x120] sm:$0xff] %v1168
        %1292 = vst [vmem:[%s269 + $0x128] sm:$0xff] %v1170
        %1293 = vst [vmem:[%s269 + $0x130] sm:$0xff] %v1172
        %1294 = vst [vmem:[%s269 + $0x138] sm:$0xff] %v1174
        %1295 = vst [vmem:[%s269 + $0x140] sm:$0xff] %v1176
        %1296 = vst [vmem:[%s269 + $0x148] sm:$0xff] %v1178
        %1297 = vst [vmem:[%s269 + $0x150] sm:$0xff] %v1180
        %1298 = vst [vmem:[%s269 + $0x158] sm:$0xff] %v1182
        %1299 = vst [vmem:[%s269 + $0x160] sm:$0xff] %v1184
        %1300 = vst [vmem:[%s269 + $0x168] sm:$0xff] %v1186
        %1301 = vst [vmem:[%s269 + $0x170] sm:$0xff] %v1188
        %1302 = vst [vmem:[%s269 + $0x178] sm:$0xff] %v1190
        %1303 = vst [vmem:[%s269 + $0x180] sm:$0xff] %v1192
        %1304 = vst [vmem:[%s269 + $0x188] sm:$0xff] %v1194
        %1305 = vst [vmem:[%s269 + $0x190] sm:$0xff] %v1196
        %1306 = vst [vmem:[%s269 + $0x198] sm:$0xff] %v1198
        %1307 = vst [vmem:[%s269 + $0x1a0] sm:$0xff] %v1200
        %1308 = vst [vmem:[%s269 + $0x1a8] sm:$0xff] %v1202
        %1309 = vst [vmem:[%s269 + $0x1b0] sm:$0xff] %v1204
        %1310 = vst [vmem:[%s269 + $0x1b8] sm:$0xff] %v1206
        %1311 = vst [vmem:[%s269 + $0x1c0] sm:$0xff] %v1208
        %1312 = vst [vmem:[%s269 + $0x1c8] sm:$0xff] %v1210
        %1313 = vst [vmem:[%s269 + $0x1d0] sm:$0xff] %v1212
        %1314 = vst [vmem:[%s269 + $0x1d8] sm:$0xff] %v1214
        %1315 = vst [vmem:[%s269 + $0x1e0] sm:$0xff] %v1216
        %1316 = vst [vmem:[%s269 + $0x1e8] sm:$0xff] %v1218
        %1317 = vst [vmem:[%s269 + $0x1f0] sm:$0xff] %v1220
        %1318 = vst [vmem:[%s269 + $0x1f8] sm:$0xff] %v1222
        %s1319 = sand.u32 %s124, 1
        %s1320 = scalar_lea.sflag [#allocation4], %s1319
        %s1321 = sand.u32 %s124, 1
        %s1322 = smul.addr %s1321, 256
        %s1323 = scalar_lea.vmem [#allocation7], %s1322
        %s1324 = sand.u32 %s150, 1
        %s1325 = scalar_lea.sflag [#allocation9], %s1324
        %s1326 = sand.u32 %s150, 1
        %s1327 = smul.addr %s1326, 512
        %s1328 = scalar_lea.vmem [#allocation8], %s1327
        // Predicated region
        $region45: #{tpu_custom_call.1} parent=35 // pred_check
          %p1329 = pneg %p134
        $region46: #{tpu_custom_call.1} parent=35 // pred_check_branch
          %1331 = sbr.rel (%p1329) target = $region48
        $region47: #{tpu_custom_call.1} parent=35 // pred_region
          %s1332 = smul.u32 32, %s27
          %s1334 = ssub.s32 4096, 4096
          %1335 = vsyncadd %s1320, %s1334
          %s1336 = smul.addr %s1332, 128
          %s1337 = scalar_lea.hbm %s4, %s1336
          %s1338 = sshll.u32 %s1323, 4
          %s1339 = int_to_ptr.vmem [resolvable:$true] %s1338
          %1344 = dma.vmem_to_hbm [thread:$0]  %s1339, 4096, %s1337, %s1320, 128, 128, 8
        $region48: #{tpu_custom_call.1} parent=35 // pred_fallthru
          _
        // Predicated region
        $region49: #{tpu_custom_call.1} parent=35 // pred_check
          %p1345 = pneg %p160
        $region50: #{tpu_custom_call.1} parent=35 // pred_check_branch
          %1347 = sbr.rel (%p1345) target = $region52
        $region51: #{tpu_custom_call.1} parent=35 // pred_region
          %s1348 = smul.u32 32, %s27
          %s1350 = ssub.s32 8192, 8192
          %1351 = vsyncadd %s1325, %s1350
          %s1352 = smul.addr %s1348, 2
          %s1353 = smul.addr %s1352, 128
          %s1354 = scalar_lea.hbm %s5, %s1353
          %s1355 = sshll.u32 %s1328, 4
          %s1356 = int_to_ptr.vmem [resolvable:$true] %s1355
          %1361 = dma.vmem_to_hbm [thread:$0]  %s1356, 8192, %s1354, %s1325, 256, 256, 16
        $region52: #{tpu_custom_call.1} parent=35 // pred_fallthru
          _
      $region36: #{tpu_custom_call.1} parent=5 // pred_fallthru
        _
      %p1362 = scmp.le.s32.totalorder 2, %s22
      // Predicated region
      $region53: #{tpu_custom_call.1} parent=5 // pred_check
        %p1363 = pneg %p1362
      $region54: #{tpu_custom_call.1} parent=5 // pred_check_branch
        %1365 = sbr.rel (%p1363) target = $region56
      $region55: #{tpu_custom_call.1} parent=5 // pred_region
        %s1366 = ssub.s32 %s22, 2
        // Predicated region
        $region57: #{tpu_custom_call.1} parent=55 // pred_check
          %p1367 = pneg %p140
        $region58: #{tpu_custom_call.1} parent=55 // pred_check_branch
          %1369 = sbr.rel (%p1367) target = $region60
        $region59: #{tpu_custom_call.1} parent=55 // pred_region
          %s1370 = sand.u32 %s125, 1
          %s1371 = scalar_lea.sflag [#allocation4], %s1370
          %s1372 = sand.u32 %s125, 1
          %s1373 = smul.addr %s1372, 256
          %s1374 = scalar_lea.vmem [#allocation7], %s1373
          %1375 = dma.done %s1371, 4096
        $region60: #{tpu_custom_call.1} parent=55 // pred_fallthru
          _
        // Predicated region
        $region61: #{tpu_custom_call.1} parent=55 // pred_check
          %p1376 = pneg %p166
        $region62: #{tpu_custom_call.1} parent=55 // pred_check_branch
          %1378 = sbr.rel (%p1376) target = $region64
        $region63: #{tpu_custom_call.1} parent=55 // pred_region
          %s1379 = sand.u32 %s151, 1
          %s1380 = scalar_lea.sflag [#allocation9], %s1379
          %s1381 = sand.u32 %s151, 1
          %s1382 = smul.addr %s1381, 512
          %s1383 = scalar_lea.vmem [#allocation8], %s1382
          %1384 = dma.done %s1380, 8192
        $region64: #{tpu_custom_call.1} parent=55 // pred_fallthru
          _
      $region56: #{tpu_custom_call.1} parent=5 // pred_fallthru
        _
    $region6: #{tpu_custom_call.1} parent=1 // loop_footer
      %s26 = sadd.s32 1, %s22
    $region7: #{tpu_custom_call.1} parent=1 // loop_footer_branch
      %21 = sbr.rel target = $region3
    $region8: #{tpu_custom_call.1} parent=1 // loop_exit
      _
    %1385 = vsyncpa [#allocation3], 1
    %s1386 = scalar_lea.sflag [#allocation3], 1
    %1387 = vsyncpa %s1386, 1
    %1388 = vsyncpa [#allocation6], 1
    %1389 = vsyncpa [#allocation4], 1
    %s1390 = scalar_lea.sflag [#allocation4], 1
    %1391 = vsyncpa %s1390, 1
    %1392 = vsyncpa [#allocation9], 1
    %s1393 = scalar_lea.sflag [#allocation9], 1
    %1394 = vsyncpa %s1393, 1

</llo_original>
